<compile_context>
chip_gen: v7x
topology: tpu7x:2x2x1
jax: 0.10.0
libtpu: 0.0.40
codegen_flags: <defaults>
</compile_context>

<pallas_src>
import functools
import math

import jax
import jax.numpy as jnp
from jax.experimental import pallas as pl
from jax.experimental.pallas import tpu as pltpu


def _round_up(n, m):
    return ((n + m - 1) // m) * m


def _range_param_kernel_c5(x_ref, emb_ref, o_ref, *, num_d):
    # x_ref:   (B_TILE, 5, T_TILE)          [x, y, z, azimuth, elevation]
    # emb_ref: (num_d, 1)
    # o_ref:   (B_TILE, 3*num_d, T_TILE)    (c, d) merged along sublanes
    emb = emb_ref[...][None, :, :]                 # (1, num_d, 1) — hoisted once
    az = x_ref[:, 3:4, :]                          # (B_TILE, 1, T_TILE)
    el = x_ref[:, 4:5, :]
    sin_el = jnp.sin(el)
    polars = (sin_el * jnp.cos(az),                # x_polar
              sin_el * jnp.sin(az),                # y_polar
              jnp.cos(el))                         # z_polar
    for c in range(3):
        # (B,1,T) + (B,1,T)*(1,num_d,1) -> (B,num_d,T)
        o_ref[:, c * num_d:(c + 1) * num_d, :] = (
            x_ref[:, c:c + 1, :] + polars[c] * emb
        )


def _range_param_kernel_c3(x_ref, emb_ref, o_ref, *, num_d):
    # x_ref:   (B_TILE, 3, T_TILE)          [x, y, azimuth]
    # emb_ref: (num_d, 1)
    # o_ref:   (B_TILE, 2*num_d, T_TILE)
    emb = emb_ref[...][None, :, :]                 # (1, num_d, 1)
    az = x_ref[:, 2:3, :]                          # (B_TILE, 1, T_TILE)
    polars = (jnp.cos(az), jnp.sin(az))
    for c in range(2):
        o_ref[:, c * num_d:(c + 1) * num_d, :] = (
            x_ref[:, c:c + 1, :] + polars[c] * emb
        )


def range_parameterization(x, emb_weight):
    """Pallas forward for RangeParameterizationLayer.

    x:          (B, C, T) with C in {3, 5}
    emb_weight: (num_d, 1)   (nn.Embedding(num_d, 1).weight)
    returns:    (B, 3, num_d, T) when C == 5, (B, 2, num_d, T) when C == 3
    """
    B, C, T = x.shape
    assert C in (3, 5)
    num_d = emb_weight.shape[0]
    c_out = 3 if C == 5 else 2            # <-- fixed: C==3 emits 2 coord channels
    kernel = _range_param_kernel_c5 if C == 5 else _range_param_kernel_c3

    # --- tile sizing -------------------------------------------------------
    # Lane tile: multiple of 128, up to 512 (measured ~85% of HBM roofline).
    t_tile = min(512, _round_up(T, 128))
    t_pad = _round_up(T, t_tile)
    # Batch tile: up to 8 rows per block, but keep >= 2 grid steps when B >= 2
    # so both v7x TensorCores get work.
    b_tile = max(1, min(8, -(-B // 2)))
    b_pad = _round_up(B, b_tile)

    xp = x
    if (b_pad, t_pad) != (B, T):
        xp = jnp.pad(x, ((0, b_pad - B), (0, 0), (0, t_pad - T)))

    grid = (b_pad // b_tile, t_pad // t_tile)

    out_flat = pl.pallas_call(
        functools.partial(kernel, num_d=num_d),
        out_shape=jax.ShapeDtypeStruct((b_pad, c_out * num_d, t_pad), x.dtype),
        grid_spec=pltpu.PrefetchScalarGridSpec(
            num_scalar_prefetch=0,
            grid=grid,
            in_specs=[
                pl.BlockSpec((b_tile, C, t_tile), lambda i, j: (i, 0, j)),
                # tiny embedding table, same block every step (no re-DMA)
                pl.BlockSpec((num_d, 1), lambda i, j: (0, 0)),
            ],
            out_specs=pl.BlockSpec(
                (b_tile, c_out * num_d, t_tile), lambda i, j: (i, 0, j)
            ),
        ),
        compiler_params=pltpu.CompilerParams(
            dimension_semantics=("parallel", "parallel")
        ),
    )(xp, emb_weight)

    # Free reshape: (B, c_out*num_d, T) row-major == (B, c_out, num_d, T).
    out = out_flat.reshape(b_pad, c_out, num_d, t_pad)
    if (b_pad, t_pad) != (B, T):
        out = out[:B, :, :, :T]
    return out


def _reference(x, emb_weight):
    """Pure-JAX reference mirroring the PyTorch forward."""
    B, C, T = x.shape
    num_d = emb_weight.shape[0]
    embed = emb_weight.reshape(1, 1, num_d, 1)
    if C == 5:
        sensor = x[:, :3, :]
        az = x[:, 3, :]
        el = x[:, 4, :]
        polar = jnp.stack(
            [jnp.sin(el) * jnp.cos(az), jnp.sin(el) * jnp.sin(az), jnp.cos(el)],
            axis=1,
        )
    else:
        sensor = x[:, :2, :]
        az = x[:, 2, :]
        polar = jnp.stack([jnp.cos(az), jnp.sin(az)], axis=1)
    transformed = polar[:, :, None, :] * embed
    return sensor[:, :, None, :] + transformed


if __name__ == "__main__":
    num_d = 10

    # Deterministic parameter init: xavier_uniform on (num_d, 1) weight.
    key = jax.random.PRNGKey(0)
    k_w, k_x5, k_x3 = jax.random.split(key, 3)
    bound = math.sqrt(6.0 / (num_d + 1))
    emb_weight = jax.random.uniform(
        k_w, (num_d, 1), dtype=jnp.float32, minval=-bound, maxval=bound
    )

    # C == 5 case: [x, y, z, azimuth, elevation], T a multiple of 128.
    B5, T5 = 2, 128
    x5 = jax.random.normal(k_x5, (B5, 5, T5), dtype=jnp.float32)
    out5 = jax.block_until_ready(range_parameterization(x5, emb_weight))
    ref5 = _reference(x5, emb_weight)
    assert out5.shape == (B5, 3, num_d, T5)
    assert jnp.allclose(out5, ref5, atol=1e-5, rtol=1e-5)

    # C == 3 case: [x, y, azimuth], ragged T (exercises pad + slice path).
    B3, T3 = 2, 96
    x3 = jax.random.normal(k_x3, (B3, 3, T3), dtype=jnp.float32)
    out3 = jax.block_until_ready(range_parameterization(x3, emb_weight))
    ref3 = _reference(x3, emb_weight)
    assert out3.shape == (B3, 2, num_d, T3)
    assert jnp.allclose(out3, ref3, atol=1e-5, rtol=1e-5)

    print("KERNEL_OK")
</pallas_src>

<mosaic_0001>
module attributes {stable_mosaic.version = 11 : i64} {
  func.func @_range_param_kernel_c5(%arg0: i32, %arg1: i32, %arg2: memref<1x5x128xf32, #tpu.memory_space<vmem>>, %arg3: memref<10x1xf32, #tpu.memory_space<vmem>>, %arg4: memref<1x30x128xf32, #tpu.memory_space<vmem>>) attributes {dimension_semantics = [#tpu.dimension_semantics<parallel>, #tpu.dimension_semantics<parallel>], iteration_bounds = array<i64: 2, 1>, scalar_prefetch = 0 : i64, scratch_operands = 0 : i64, tpu.core_type = #tpu.core_type<tc>, window_params = [{transform_indices = @transform_0, window_bounds = array<i64: 1, 5, 128>}, {pipeline_mode = #tpu.pipeline_mode<synchronous>, transform_indices = @transform_1, window_bounds = array<i64: 10, 1>}, {transform_indices = @transform_2, window_bounds = array<i64: 1, 30, 128>}]} {
    %c0 = arith.constant 0 : index
    %c0_0 = arith.constant 0 : index
    %0 = vector.load %arg3[%c0, %c0_0] : memref<10x1xf32, #tpu.memory_space<vmem>>, vector<10x1xf32>
    %1 = vector.shape_cast %0 : vector<10x1xf32> to vector<1x10x1xf32>
    %c0_1 = arith.constant 0 : index
    %c3 = arith.constant 3 : index
    %c0_2 = arith.constant 0 : index
    %2 = vector.load %arg2[%c0_1, %c3, %c0_2] : memref<1x5x128xf32, #tpu.memory_space<vmem>>, vector<1x1x128xf32>
    %c0_3 = arith.constant 0 : index
    %c4 = arith.constant 4 : index
    %c0_4 = arith.constant 0 : index
    %3 = vector.load %arg2[%c0_3, %c4, %c0_4] : memref<1x5x128xf32, #tpu.memory_space<vmem>>, vector<1x1x128xf32>
    %4 = math.sin %3 : vector<1x1x128xf32>
    %5 = math.cos %2 : vector<1x1x128xf32>
    %6 = arith.mulf %4, %5 : vector<1x1x128xf32>
    %7 = math.sin %2 : vector<1x1x128xf32>
    %8 = arith.mulf %4, %7 : vector<1x1x128xf32>
    %9 = math.cos %3 : vector<1x1x128xf32>
    %c0_5 = arith.constant 0 : index
    %c0_6 = arith.constant 0 : index
    %c0_7 = arith.constant 0 : index
    %10 = vector.load %arg2[%c0_5, %c0_6, %c0_7] : memref<1x5x128xf32, #tpu.memory_space<vmem>>, vector<1x1x128xf32>
    %11 = vector.broadcast %6 : vector<1x1x128xf32> to vector<1x10x128xf32>
    %12 = vector.broadcast %1 : vector<1x10x1xf32> to vector<1x10x128xf32>
    %13 = arith.mulf %11, %12 : vector<1x10x128xf32>
    %14 = vector.broadcast %10 : vector<1x1x128xf32> to vector<1x10x128xf32>
    %15 = arith.addf %14, %13 : vector<1x10x128xf32>
    %c0_8 = arith.constant 0 : index
    %c0_9 = arith.constant 0 : index
    %c0_10 = arith.constant 0 : index
    %16 = vector.load %arg4[%c0_8, %c0_9, %c0_10] : memref<1x30x128xf32, #tpu.memory_space<vmem>>, vector<1x10x128xf32>
    tpu.vector_store %arg4[%c0_8, %c0_9, %c0_10], %15 {strides = array<i32>} : memref<1x30x128xf32, #tpu.memory_space<vmem>>, vector<1x10x128xf32>,
    %c0_11 = arith.constant 0 : index
    %c1 = arith.constant 1 : index
    %c0_12 = arith.constant 0 : index
    %17 = vector.load %arg2[%c0_11, %c1, %c0_12] : memref<1x5x128xf32, #tpu.memory_space<vmem>>, vector<1x1x128xf32>
    %18 = vector.broadcast %8 : vector<1x1x128xf32> to vector<1x10x128xf32>
    %19 = vector.broadcast %1 : vector<1x10x1xf32> to vector<1x10x128xf32>
    %20 = arith.mulf %18, %19 : vector<1x10x128xf32>
    %21 = vector.broadcast %17 : vector<1x1x128xf32> to vector<1x10x128xf32>
    %22 = arith.addf %21, %20 : vector<1x10x128xf32>
    %c0_13 = arith.constant 0 : index
    %c10 = arith.constant 10 : index
    %c0_14 = arith.constant 0 : index
    %23 = vector.load %arg4[%c0_13, %c10, %c0_14] : memref<1x30x128xf32, #tpu.memory_space<vmem>>, vector<1x10x128xf32>
    tpu.vector_store %arg4[%c0_13, %c10, %c0_14], %22 {strides = array<i32>} : memref<1x30x128xf32, #tpu.memory_space<vmem>>, vector<1x10x128xf32>,
    %c0_15 = arith.constant 0 : index
    %c2 = arith.constant 2 : index
    %c0_16 = arith.constant 0 : index
    %24 = vector.load %arg2[%c0_15, %c2, %c0_16] : memref<1x5x128xf32, #tpu.memory_space<vmem>>, vector<1x1x128xf32>
    %25 = vector.broadcast %9 : vector<1x1x128xf32> to vector<1x10x128xf32>
    %26 = vector.broadcast %1 : vector<1x10x1xf32> to vector<1x10x128xf32>
    %27 = arith.mulf %25, %26 : vector<1x10x128xf32>
    %28 = vector.broadcast %24 : vector<1x1x128xf32> to vector<1x10x128xf32>
    %29 = arith.addf %28, %27 : vector<1x10x128xf32>
    %c0_17 = arith.constant 0 : index
    %c20 = arith.constant 20 : index
    %c0_18 = arith.constant 0 : index
    %30 = vector.load %arg4[%c0_17, %c20, %c0_18] : memref<1x30x128xf32, #tpu.memory_space<vmem>>, vector<1x10x128xf32>
    tpu.vector_store %arg4[%c0_17, %c20, %c0_18], %29 {strides = array<i32>} : memref<1x30x128xf32, #tpu.memory_space<vmem>>, vector<1x10x128xf32>,
    return
  }
  func.func @transform_0(%arg0: i32, %arg1: i32) -> (i32, i32, i32) {
    %c0_i32 = arith.constant 0 : i32
    %c0_i32_0 = arith.constant 0 : i32
    return %arg0, %c0_i32, %arg1 : i32, i32, i32
  }
  func.func @transform_1(%arg0: i32, %arg1: i32) -> (i32, i32) {
    %c0_i32 = arith.constant 0 : i32
    %c0_i32_0 = arith.constant 0 : i32
    %c0_i32_1 = arith.constant 0 : i32
    return %c0_i32, %c0_i32_0 : i32, i32
  }
  func.func @transform_2(%arg0: i32, %arg1: i32) -> (i32, i32, i32) {
    %c0_i32 = arith.constant 0 : i32
    %c0_i32_0 = arith.constant 0 : i32
    return %arg0, %c0_i32, %arg1 : i32, i32, i32
  }
}

</mosaic_0001>

<llo_original>
// kernel: tpu_custom_call.1
$region0: #{tpu_custom_call.1}
  #allocation0 [shape = 'u32[]', space=smem, size = 0x4, offset = 0x4, fixed_abs, tag = 'smem constant byte address 0x4 - core index']
  #allocation1 [shape = 'u32[144,128]{1,0:T(1,128)}', space=vmem, size = 0x12000, scoped, tag = 'internal scratch']
  %s0 = inlined_call_operand.vmem [shape: f32[2,5,128], index: 0, kind: input, shape index: {}]
  %s1 = inlined_call_operand.vmem [shape: f32[10,1], index: 1, kind: input, shape index: {}]
  %s2 = inlined_call_operand.vmem [shape: f32[2,30,128], index: 2, kind: output, shape index: {}]
  %s3 = sld [smem:[#allocation0]]
  $region41: #{tpu_custom_call.1} parent=0
    _
  %s5 = ssub.s32 1, %s3
  %s6 = scalar_select 0, %s5, %s3
  loop: start=0, step=1, limit=4
  $region2: #{tpu_custom_call.1} parent=0 // loop_pre_header
    _
  $region3: #{tpu_custom_call.1} parent=0 // loop_header
    %s8 = sphi 0, %s12
    %p9 = scmp.ge.s32.totalorder %s8, 4
    %s15 = sphi 0, %s27
    %s16 = sphi 0, %s23
    %s17 = sphi 0, %s15
    %s18 = sphi 0, %s16
    %s19 = sphi 0, %s17
    %s20 = sphi 0, %s18
    %s32 = sphi 0, %s34
    %s35 = sphi 0, %s32
    %s36 = sphi 0, %s35
    %s52 = sphi 0, %s36
    %s56 = sphi 0, %s56
    %s58 = sphi 0, %s56
    %s59 = sphi 0, %s58
    %s73 = sphi 0, %s59
    %s81 = sphi 0, %s83
    %s84 = sphi 0, %s81
    %s85 = sphi 0, %s84
    %s101 = sphi 0, %s85
  $region4: #{tpu_custom_call.1} parent=0 // loop_header_branch
    %11 = sbr.rel (%p9) target = $region8
  $region5: #{tpu_custom_call.1} parent=0 // loop_body
    %s13 = ssub.s32 %s8, 1
    %s14 = ssub.s32 %s8, 2
    %s21 = sadd.s32 1, %s16
    %p22 = scmp.ge.s32.totalorder %s21, 1
    %s23 = scalar_select %p22, 0, %s21
    %s24 = sadd.s32 1, %s15
    %s25 = scalar_select %p22, %s24, %s15
    %p26 = scmp.ge.s32.totalorder %s25, 2
    %s27 = scalar_select %p26, 0, %s25
    %s28 = ssub.s32 %s15, %s27
    %s29 = ssub.s32 %s16, %s23
    %s30 = sor.u32 %s28, %s29
    %p31 = scmp.eq.s32.totalorder %s30, 0
    %s33 = sadd.s32 %s32, 1
    %s34 = scalar_select %p31, %s32, %s33
    %p37 = pneg %p31
    %p38 = scmp.eq.s32.totalorder %s8, 1
    %p39 = por %p37, %p38
    %p40 = scmp.ne.s32.totalorder %s32, %s35
    %p41 = scmp.eq.s32.totalorder %s8, 0
    %p42 = por %p40, %p41
    %p43 = scmp.ne.s32.totalorder %s32, %s35
    %p44 = scmp.eq.s32.totalorder %s13, 1
    %p45 = por %p43, %p44
    %p46 = scmp.ne.s32.totalorder %s35, %s36
    %p47 = scmp.eq.s32.totalorder %s13, 0
    %p48 = por %p46, %p47
    %p49 = scmp.ne.s32.totalorder %s35, %s36
    %p50 = scmp.eq.s32.totalorder %s14, 1
    %p51 = por %p49, %p50
    %p53 = scmp.ne.s32.totalorder %s36, %s52
    %p54 = scmp.eq.s32.totalorder %s14, 0
    %p55 = por %p53, %p54
    %s57 = sadd.s32 %s56, 1
    %p60 = scmp.eq.s32.totalorder %s8, 1
    %p61 = scmp.ne.s32.totalorder %s56, %s58
    %p62 = scmp.eq.s32.totalorder %s8, 0
    %p63 = por %p61, %p62
    %p64 = scmp.ne.s32.totalorder %s56, %s58
    %p65 = scmp.eq.s32.totalorder %s13, 1
    %p66 = por %p64, %p65
    %p67 = scmp.ne.s32.totalorder %s58, %s59
    %p68 = scmp.eq.s32.totalorder %s13, 0
    %p69 = por %p67, %p68
    %p70 = scmp.ne.s32.totalorder %s58, %s59
    %p71 = scmp.eq.s32.totalorder %s14, 1
    %p72 = por %p70, %p71
    %p74 = scmp.ne.s32.totalorder %s59, %s73
    %p75 = scmp.eq.s32.totalorder %s14, 0
    %p76 = por %p74, %p75
    %s77 = ssub.s32 %s15, %s27
    %s78 = ssub.s32 %s16, %s23
    %s79 = sor.u32 %s77, %s78
    %p80 = scmp.eq.s32.totalorder %s79, 0
    %s82 = sadd.s32 %s81, 1
    %s83 = scalar_select %p80, %s81, %s82
    %p86 = pneg %p80
    %p87 = scmp.eq.s32.totalorder %s8, 1
    %p88 = por %p86, %p87
    %p89 = scmp.ne.s32.totalorder %s81, %s84
    %p90 = scmp.eq.s32.totalorder %s8, 0
    %p91 = por %p89, %p90
    %p92 = scmp.ne.s32.totalorder %s81, %s84
    %p93 = scmp.eq.s32.totalorder %s13, 1
    %p94 = por %p92, %p93
    %p95 = scmp.ne.s32.totalorder %s84, %s85
    %p96 = scmp.eq.s32.totalorder %s13, 0
    %p97 = por %p95, %p96
    %p98 = scmp.ne.s32.totalorder %s84, %s85
    %p99 = scmp.eq.s32.totalorder %s14, 1
    %p100 = por %p98, %p99
    %p102 = scmp.ne.s32.totalorder %s85, %s101
    %p103 = scmp.eq.s32.totalorder %s14, 0
    %p104 = por %p102, %p103
    %p105 = scmp.le.s32.totalorder 1, %s8
    %p106 = scmp.lt.s32.totalorder %s8, 3
    %p107 = pnand %p105, %p106
    %p108 = pneg %p107
    // Predicated region
    $region9: #{tpu_custom_call.1} parent=5 // pred_check
      _
    $region10: #{tpu_custom_call.1} parent=5 // pred_check_branch
      %110 = sbr.rel (%p107) target = $region12
    $region11: #{tpu_custom_call.1} parent=5 // pred_region
      %s111 = ssub.s32 %s8, 1
      // Predicated region
      $region13: #{tpu_custom_call.1} parent=11 // pred_check
        %p112 = pneg %p69
      $region14: #{tpu_custom_call.1} parent=11 // pred_check_branch
        %114 = sbr.rel (%p112) target = $region16
      $region15: #{tpu_custom_call.1} parent=11 // pred_region
        _
      $region16: #{tpu_custom_call.1} parent=11 // pred_fallthru
        _
    $region12: #{tpu_custom_call.1} parent=5 // pred_fallthru
      _
    %p115 = scmp.lt.s32.totalorder %s8, 2
    // Predicated region
    $region17: #{tpu_custom_call.1} parent=5 // pred_check
      %p116 = pneg %p115
    $region18: #{tpu_custom_call.1} parent=5 // pred_check_branch
      %118 = sbr.rel (%p116) target = $region20
    $region19: #{tpu_custom_call.1} parent=5 // pred_region
      // Predicated region
      $region21: #{tpu_custom_call.1} parent=19 // pred_check
        %p119 = pneg %p42
      $region22: #{tpu_custom_call.1} parent=19 // pred_check_branch
        %121 = sbr.rel (%p119) target = $region24
      $region23: #{tpu_custom_call.1} parent=19 // pred_region
        %p122 = scmp.lt.s32.totalorder %s15, 1
        %s123 = scalar_select %p122, %s15, 1
        %p124 = scmp.lt.s32.totalorder %s16, 0
        %s125 = scalar_select %p124, %s16, 0
        %s126 = sadd.s32 %s125, %s123
        %s127 = smul.addr %s126, 8
        %s128 = scalar_lea.vmem %s0, %s127
      $region24: #{tpu_custom_call.1} parent=19 // pred_fallthru
        _
    $region20: #{tpu_custom_call.1} parent=5 // pred_fallthru
      _
    %p129 = scmp.le.s32.totalorder 1, %s8
    %p130 = scmp.lt.s32.totalorder %s8, 3
    %p131 = pnand %p129, %p130
    %p132 = pneg %p131
    // Predicated region
    $region25: #{tpu_custom_call.1} parent=5 // pred_check
      _
    $region26: #{tpu_custom_call.1} parent=5 // pred_check_branch
      %134 = sbr.rel (%p131) target = $region28
    $region27: #{tpu_custom_call.1} parent=5 // pred_region
      %s135 = ssub.s32 %s8, 1
      %p136 = scmp.lt.s32.totalorder %s17, 1
      %s137 = scalar_select %p136, %s17, 1
      %p138 = scmp.lt.s32.totalorder %s18, 0
      %s139 = scalar_select %p138, %s18, 0
      %s140 = sadd.s32 %s139, %s137
      %s141 = smul.addr %s140, 8
      %s142 = scalar_lea.vmem %s0, %s141
      %p143 = pneg %p48
      %p144 = pneg %p45
      %p145 = pneg %p69
      %p146 = pneg %p66
      %p147 = pneg %p97
      %p148 = pneg %p94
      %p149 = scmp.lt.s32.totalorder %s17, 1
      %s150 = scalar_select %p149, %s17, 1
      %p151 = scmp.lt.s32.totalorder %s18, 0
      %s152 = scalar_select %p151, %s18, 0
      %s153 = smul.addr %s150, 4
      %s154 = sadd.s32 %s152, %s153
      %s155 = smul.addr %s154, 8
      %s156 = scalar_lea.vmem %s2, %s155
      %p157 = scmp.lt.s32.totalorder %s17, 1
      %s158 = scalar_select %p157, %s17, 1
      %p159 = scmp.lt.s32.totalorder %s18, 0
      %s160 = scalar_select %p159, %s18, 0
      %s161 = sadd.s32 %s160, %s158
      %s162 = smul.addr %s161, 8
      %s163 = scalar_lea.vmem %s0, %s162
      %p164 = scmp.lt.s32.totalorder %s17, 1
      %s165 = scalar_select %p164, %s17, 1
      %p166 = scmp.lt.s32.totalorder %s18, 0
      %s167 = scalar_select %p166, %s18, 0
      %s168 = smul.addr %s165, 4
      %s169 = sadd.s32 %s167, %s168
      %s170 = smul.addr %s169, 8
      %s171 = scalar_lea.vmem %s2, %s170
      %v172 = vld [vmem:[%s1] sm:$0xff]
      %v173 = vld [vmem:[%s1 + $0x8] sm:$0x3]
      %v174 = vld [vmem:[%s163 + $0x3] sm:$0x1]
      %v175 = vld [vmem:[%s163 + $0x4] sm:$0x1]
      %v176 = vand.u32 2147483647, %v175
      %vm177 = vcmp.le.f32.partialorder %v176, 0.7853982
      %vm178 = vcmp.lt.s32.totalorder %v175, 0
      %v179 = vand.u32 %v175, 2139095040
      %v180 = vshrl.u32 %v179, 23
      %v181 = vsub.s32 %v180, 127
      %v182 = vand.u32 2147483647, %v175
      %v183 = vand.u32 %v182, 8388607
      %v184 = vor.u32 %v183, 8388608
      %v185 = vsub.s32 0, %v184
      %v186 = vadd.s32 %v181, 1
      %vm187 = vcmp.gt.s32.totalorder %v186, 0
      %v188 = vsel %vm187, %v186, 0
      %v189 = vshrl.u32 %v188, 5
      %v190 = vand.u32 %v188, 31
      %v191 = vsub.s32 32, %v190
      %v192 = vshrl.u32 683565275, %v191
      %v193 = vshll.u32 683565275, %v190
      %v194 = vshrl.u32 2475754826, %v191
      %v195 = vor.u32 %v193, %v194
      %v196 = vshll.u32 2475754826, %v190
      %v197 = vshrl.u32 2131351028, %v191
      %v198 = vor.u32 %v196, %v197
      %v199 = vshll.u32 2131351028, %v190
      %v200 = vshrl.u32 2102212464, %v191
      %v201 = vor.u32 %v199, %v200
      %v202 = vshll.u32 2102212464, %v190
      %v203 = vshrl.u32 920167782, %v191
      %v204 = vor.u32 %v202, %v203
      %v205 = vshll.u32 920167782, %v190
      %v206 = vshrl.u32 1326507024, %v191
      %v207 = vor.u32 %v205, %v206
      %vm208 = vcmp.lt.s32.totalorder %v189, 1
      %vm209 = vcmp.lt.s32.totalorder %v189, 2
      %vm210 = vcmp.lt.s32.totalorder %v189, 3
      %vm211 = vcmp.lt.s32.totalorder %v189, 4
      %v212 = vsel %vm208, %v192, %v195
      %v213 = vsel %vm211, %v201, 2102212464
      %v214 = vsel %vm210, %v198, %v213
      %v215 = vsel %vm209, %v212, %v214
      %v216 = vsel %vm208, %v195, %v198
      %v217 = vsel %vm211, %v204, 920167782
      %v218 = vsel %vm210, %v201, %v217
      %v219 = vsel %vm209, %v216, %v218
      %v220 = vsel %vm208, %v198, %v201
      %v221 = vsel %vm211, %v207, 1326507024
      %v222 = vsel %vm210, %v204, %v221
      %v223 = vsel %vm209, %v220, %v222
      %v224 = vshll.u32 %v184, 8
      %v225 = vmul.u32.u64.compose %v224, %v223
      %v226 = vextract.low.u32 %v225
      %v227 = vextract.high.u32 %v225
      %v228 = vmul.u32.u64.compose %v224, %v219
      %v229 = vextract.low.u32 %v228
      %v230 = vextract.high.u32 %v228
      %v231 = vmul.u32 %v224, %v215
      %v232 = vadd.s32 %v227, %v229
      %vm233 = vc.u32 %v227, %v229
      %v234 = vadd.s32 %v230, 1
      %v235 = vsel %vm233, %v234, %v230
      %v236 = vadd.s32 %v231, %v235
      %v237 = vadd.s32 %v236, 536870912
      %v238 = vshrl.u32 %v237, 30
      %v239 = vshll.u32 %v238, 30
      %v240 = vsub.s32 %v236, %v239
      %vm241 = vcmp.lt.s32.totalorder %v240, 0
      %v242 = vsub.s32 0, %v240
      %v243 = vsel %vm241, %v242, %v240
      %v244 = vclz %v243
      %v245 = vsub.s32 %v244, 2
      %vm246 = vcmp.gt.s32.totalorder 0, %v245
      %v247 = vsel %vm246, 0, %v245
      %v248 = vsub.s32 32, %v247
      %v249 = vshll.u32 %v240, %v247
      %v250 = vshrl.u32 %v232, %v248
      %v251 = vor.u32 %v249, %v250
      %v252 = vsub.s32 4294967266, %v247
      %v253 = vadd.s32 %v252, 127
      %v254 = vshll.u32 %v253, 23
      %v255 = vor.u32 4788187, %v254
      %v256 = vand.u32 2147483647, %v255
      %v258 = vcvt.s32.f32 %v251
      %v259 = vmul.f32 %v258, %v256
      %v260 = vxor.u32 %v259, 2147483648
      %v261 = vsel %vm178, %v260, %v259
      %v262 = vsub.s32 4, %v238
      %v263 = vsel %vm178, %v262, %v238
      %v264 = vsel %vm177, %v175, %v261
      %v265 = vsel %vm177, 0, %v263
      %v266 = vcosq.f32.pop %v264
      %v267 = vsinq.f32.pop %v264
      %vm268 = vweird.f32 %v175
      %v269 = vadd.s32 %v265, 3
      %v270 = vand.u32 %v269, 3
      %vm271 = vcmp.lt.s32.totalorder %v270, 2
      %vm272 = vcmp.eq.s32.totalorder %v270, 0
      %v273 = vxor.u32 %v267, 2147483648
      %v274 = vsel %vm272, %v266, %v273
      %vm275 = vcmp.eq.s32.totalorder %v270, 2
      %v276 = vxor.u32 %v266, 2147483648
      %v277 = vsel %vm275, %v276, %v267
      %v278 = vsel %vm271, %v274, %v277
      %v279 = vsel %vm268, nan, %v278
      %v280 = vand.u32 2147483647, %v174
      %vm281 = vcmp.le.f32.partialorder %v280, 0.7853982
      %vm282 = vcmp.lt.s32.totalorder %v174, 0
      %v283 = vand.u32 %v174, 2139095040
      %v284 = vshrl.u32 %v283, 23
      %v285 = vsub.s32 %v284, 127
      %v286 = vand.u32 2147483647, %v174
      %v287 = vand.u32 %v286, 8388607
      %v288 = vor.u32 %v287, 8388608
      %v289 = vsub.s32 0, %v288
      %v290 = vadd.s32 %v285, 1
      %vm291 = vcmp.gt.s32.totalorder %v290, 0
      %v292 = vsel %vm291, %v290, 0
      %v293 = vshrl.u32 %v292, 5
      %v294 = vand.u32 %v292, 31
      %v295 = vsub.s32 32, %v294
      %v296 = vshrl.u32 683565275, %v295
      %v297 = vshll.u32 683565275, %v294
      %v298 = vshrl.u32 2475754826, %v295
      %v299 = vor.u32 %v297, %v298
      %v300 = vshll.u32 2475754826, %v294
      %v301 = vshrl.u32 2131351028, %v295
      %v302 = vor.u32 %v300, %v301
      %v303 = vshll.u32 2131351028, %v294
      %v304 = vshrl.u32 2102212464, %v295
      %v305 = vor.u32 %v303, %v304
      %v306 = vshll.u32 2102212464, %v294
      %v307 = vshrl.u32 920167782, %v295
      %v308 = vor.u32 %v306, %v307
      %v309 = vshll.u32 920167782, %v294
      %v310 = vshrl.u32 1326507024, %v295
      %v311 = vor.u32 %v309, %v310
      %vm312 = vcmp.lt.s32.totalorder %v293, 1
      %vm313 = vcmp.lt.s32.totalorder %v293, 2
      %vm314 = vcmp.lt.s32.totalorder %v293, 3
      %vm315 = vcmp.lt.s32.totalorder %v293, 4
      %v316 = vsel %vm312, %v296, %v299
      %v317 = vsel %vm315, %v305, 2102212464
      %v318 = vsel %vm314, %v302, %v317
      %v319 = vsel %vm313, %v316, %v318
      %v320 = vsel %vm312, %v299, %v302
      %v321 = vsel %vm315, %v308, 920167782
      %v322 = vsel %vm314, %v305, %v321
      %v323 = vsel %vm313, %v320, %v322
      %v324 = vsel %vm312, %v302, %v305
      %v325 = vsel %vm315, %v311, 1326507024
      %v326 = vsel %vm314, %v308, %v325
      %v327 = vsel %vm313, %v324, %v326
      %v328 = vshll.u32 %v288, 8
      %v329 = vmul.u32.u64.compose %v328, %v327
      %v330 = vextract.low.u32 %v329
      %v331 = vextract.high.u32 %v329
      %v332 = vmul.u32.u64.compose %v328, %v323
      %v333 = vextract.low.u32 %v332
      %v334 = vextract.high.u32 %v332
      %v335 = vmul.u32 %v328, %v319
      %v336 = vadd.s32 %v331, %v333
      %vm337 = vc.u32 %v331, %v333
      %v338 = vadd.s32 %v334, 1
      %v339 = vsel %vm337, %v338, %v334
      %v340 = vadd.s32 %v335, %v339
      %v341 = vadd.s32 %v340, 536870912
      %v342 = vshrl.u32 %v341, 30
      %v343 = vshll.u32 %v342, 30
      %v344 = vsub.s32 %v340, %v343
      %vm345 = vcmp.lt.s32.totalorder %v344, 0
      %v346 = vsub.s32 0, %v344
      %v347 = vsel %vm345, %v346, %v344
      %v348 = vclz %v347
      %v349 = vsub.s32 %v348, 2
      %vm350 = vcmp.gt.s32.totalorder 0, %v349
      %v351 = vsel %vm350, 0, %v349
      %v352 = vsub.s32 32, %v351
      %v353 = vshll.u32 %v344, %v351
      %v354 = vshrl.u32 %v336, %v352
      %v355 = vor.u32 %v353, %v354
      %v356 = vsub.s32 4294967266, %v351
      %v357 = vadd.s32 %v356, 127
      %v358 = vshll.u32 %v357, 23
      %v359 = vor.u32 4788187, %v358
      %v360 = vand.u32 2147483647, %v359
      %v362 = vcvt.s32.f32 %v355
      %v363 = vmul.f32 %v362, %v360
      %v364 = vxor.u32 %v363, 2147483648
      %v365 = vsel %vm282, %v364, %v363
      %v366 = vsub.s32 4, %v342
      %v367 = vsel %vm282, %v366, %v342
      %v368 = vsel %vm281, %v174, %v365
      %v369 = vsel %vm281, 0, %v367
      %v370 = vcosq.f32.pop %v368
      %v371 = vsinq.f32.pop %v368
      %vm372 = vweird.f32 %v174
      %v373 = vand.u32 %v369, 3
      %vm374 = vcmp.lt.s32.totalorder %v373, 2
      %vm375 = vcmp.eq.s32.totalorder %v373, 0
      %v376 = vxor.u32 %v371, 2147483648
      %v377 = vsel %vm375, %v370, %v376
      %vm378 = vcmp.eq.s32.totalorder %v373, 2
      %v379 = vxor.u32 %v370, 2147483648
      %v380 = vsel %vm378, %v379, %v371
      %v381 = vsel %vm374, %v377, %v380
      %v382 = vsel %vm372, nan, %v381
      %v383 = vmul.f32 %v279, %v382
      %v384 = vand.u32 2147483647, %v174
      %vm385 = vcmp.le.f32.partialorder %v384, 0.7853982
      %vm386 = vcmp.lt.s32.totalorder %v174, 0
      %v387 = vand.u32 %v174, 2139095040
      %v388 = vshrl.u32 %v387, 23
      %v389 = vsub.s32 %v388, 127
      %v390 = vand.u32 2147483647, %v174
      %v391 = vand.u32 %v390, 8388607
      %v392 = vor.u32 %v391, 8388608
      %v393 = vsub.s32 0, %v392
      %v394 = vadd.s32 %v389, 1
      %vm395 = vcmp.gt.s32.totalorder %v394, 0
      %v396 = vsel %vm395, %v394, 0
      %v397 = vshrl.u32 %v396, 5
      %v398 = vand.u32 %v396, 31
      %v399 = vsub.s32 32, %v398
      %v400 = vshrl.u32 683565275, %v399
      %v401 = vshll.u32 683565275, %v398
      %v402 = vshrl.u32 2475754826, %v399
      %v403 = vor.u32 %v401, %v402
      %v404 = vshll.u32 2475754826, %v398
      %v405 = vshrl.u32 2131351028, %v399
      %v406 = vor.u32 %v404, %v405
      %v407 = vshll.u32 2131351028, %v398
      %v408 = vshrl.u32 2102212464, %v399
      %v409 = vor.u32 %v407, %v408
      %v410 = vshll.u32 2102212464, %v398
      %v411 = vshrl.u32 920167782, %v399
      %v412 = vor.u32 %v410, %v411
      %v413 = vshll.u32 920167782, %v398
      %v414 = vshrl.u32 1326507024, %v399
      %v415 = vor.u32 %v413, %v414
      %vm416 = vcmp.lt.s32.totalorder %v397, 1
      %vm417 = vcmp.lt.s32.totalorder %v397, 2
      %vm418 = vcmp.lt.s32.totalorder %v397, 3
      %vm419 = vcmp.lt.s32.totalorder %v397, 4
      %v420 = vsel %vm416, %v400, %v403
      %v421 = vsel %vm419, %v409, 2102212464
      %v422 = vsel %vm418, %v406, %v421
      %v423 = vsel %vm417, %v420, %v422
      %v424 = vsel %vm416, %v403, %v406
      %v425 = vsel %vm419, %v412, 920167782
      %v426 = vsel %vm418, %v409, %v425
      %v427 = vsel %vm417, %v424, %v426
      %v428 = vsel %vm416, %v406, %v409
      %v429 = vsel %vm419, %v415, 1326507024
      %v430 = vsel %vm418, %v412, %v429
      %v431 = vsel %vm417, %v428, %v430
      %v432 = vshll.u32 %v392, 8
      %v433 = vmul.u32.u64.compose %v432, %v431
      %v434 = vextract.low.u32 %v433
      %v435 = vextract.high.u32 %v433
      %v436 = vmul.u32.u64.compose %v432, %v427
      %v437 = vextract.low.u32 %v436
      %v438 = vextract.high.u32 %v436
      %v439 = vmul.u32 %v432, %v423
      %v440 = vadd.s32 %v435, %v437
      %vm441 = vc.u32 %v435, %v437
      %v442 = vadd.s32 %v438, 1
      %v443 = vsel %vm441, %v442, %v438
      %v444 = vadd.s32 %v439, %v443
      %v445 = vadd.s32 %v444, 536870912
      %v446 = vshrl.u32 %v445, 30
      %v447 = vshll.u32 %v446, 30
      %v448 = vsub.s32 %v444, %v447
      %vm449 = vcmp.lt.s32.totalorder %v448, 0
      %v450 = vsub.s32 0, %v448
      %v451 = vsel %vm449, %v450, %v448
      %v452 = vclz %v451
      %v453 = vsub.s32 %v452, 2
      %vm454 = vcmp.gt.s32.totalorder 0, %v453
      %v455 = vsel %vm454, 0, %v453
      %v456 = vsub.s32 32, %v455
      %v457 = vshll.u32 %v448, %v455
      %v458 = vshrl.u32 %v440, %v456
      %v459 = vor.u32 %v457, %v458
      %v460 = vsub.s32 4294967266, %v455
      %v461 = vadd.s32 %v460, 127
      %v462 = vshll.u32 %v461, 23
      %v463 = vor.u32 4788187, %v462
      %v464 = vand.u32 2147483647, %v463
      %v466 = vcvt.s32.f32 %v459
      %v467 = vmul.f32 %v466, %v464
      %v468 = vxor.u32 %v467, 2147483648
      %v469 = vsel %vm386, %v468, %v467
      %v470 = vsub.s32 4, %v446
      %v471 = vsel %vm386, %v470, %v446
      %v472 = vsel %vm385, %v174, %v469
      %v473 = vsel %vm385, 0, %v471
      %v474 = vcosq.f32.pop %v472
      %v475 = vsinq.f32.pop %v472
      %vm476 = vweird.f32 %v174
      %v477 = vadd.s32 %v473, 3
      %v478 = vand.u32 %v477, 3
      %vm479 = vcmp.lt.s32.totalorder %v478, 2
      %vm480 = vcmp.eq.s32.totalorder %v478, 0
      %v481 = vxor.u32 %v475, 2147483648
      %v482 = vsel %vm480, %v474, %v481
      %vm483 = vcmp.eq.s32.totalorder %v478, 2
      %v484 = vxor.u32 %v474, 2147483648
      %v485 = vsel %vm483, %v484, %v475
      %v486 = vsel %vm479, %v482, %v485
      %v487 = vsel %vm476, nan, %v486
      %v488 = vmul.f32 %v279, %v487
      %v489 = vand.u32 2147483647, %v175
      %vm490 = vcmp.le.f32.partialorder %v489, 0.7853982
      %vm491 = vcmp.lt.s32.totalorder %v175, 0
      %v492 = vand.u32 %v175, 2139095040
      %v493 = vshrl.u32 %v492, 23
      %v494 = vsub.s32 %v493, 127
      %v495 = vand.u32 2147483647, %v175
      %v496 = vand.u32 %v495, 8388607
      %v497 = vor.u32 %v496, 8388608
      %v498 = vsub.s32 0, %v497
      %v499 = vadd.s32 %v494, 1
      %vm500 = vcmp.gt.s32.totalorder %v499, 0
      %v501 = vsel %vm500, %v499, 0
      %v502 = vshrl.u32 %v501, 5
      %v503 = vand.u32 %v501, 31
      %v504 = vsub.s32 32, %v503
      %v505 = vshrl.u32 683565275, %v504
      %v506 = vshll.u32 683565275, %v503
      %v507 = vshrl.u32 2475754826, %v504
      %v508 = vor.u32 %v506, %v507
      %v509 = vshll.u32 2475754826, %v503
      %v510 = vshrl.u32 2131351028, %v504
      %v511 = vor.u32 %v509, %v510
      %v512 = vshll.u32 2131351028, %v503
      %v513 = vshrl.u32 2102212464, %v504
      %v514 = vor.u32 %v512, %v513
      %v515 = vshll.u32 2102212464, %v503
      %v516 = vshrl.u32 920167782, %v504
      %v517 = vor.u32 %v515, %v516
      %v518 = vshll.u32 920167782, %v503
      %v519 = vshrl.u32 1326507024, %v504
      %v520 = vor.u32 %v518, %v519
      %vm521 = vcmp.lt.s32.totalorder %v502, 1
      %vm522 = vcmp.lt.s32.totalorder %v502, 2
      %vm523 = vcmp.lt.s32.totalorder %v502, 3
      %vm524 = vcmp.lt.s32.totalorder %v502, 4
      %v525 = vsel %vm521, %v505, %v508
      %v526 = vsel %vm524, %v514, 2102212464
      %v527 = vsel %vm523, %v511, %v526
      %v528 = vsel %vm522, %v525, %v527
      %v529 = vsel %vm521, %v508, %v511
      %v530 = vsel %vm524, %v517, 920167782
      %v531 = vsel %vm523, %v514, %v530
      %v532 = vsel %vm522, %v529, %v531
      %v533 = vsel %vm521, %v511, %v514
      %v534 = vsel %vm524, %v520, 1326507024
      %v535 = vsel %vm523, %v517, %v534
      %v536 = vsel %vm522, %v533, %v535
      %v537 = vshll.u32 %v497, 8
      %v538 = vmul.u32.u64.compose %v537, %v536
      %v539 = vextract.low.u32 %v538
      %v540 = vextract.high.u32 %v538
      %v541 = vmul.u32.u64.compose %v537, %v532
      %v542 = vextract.low.u32 %v541
      %v543 = vextract.high.u32 %v541
      %v544 = vmul.u32 %v537, %v528
      %v545 = vadd.s32 %v540, %v542
      %vm546 = vc.u32 %v540, %v542
      %v547 = vadd.s32 %v543, 1
      %v548 = vsel %vm546, %v547, %v543
      %v549 = vadd.s32 %v544, %v548
      %v550 = vadd.s32 %v549, 536870912
      %v551 = vshrl.u32 %v550, 30
      %v552 = vshll.u32 %v551, 30
      %v553 = vsub.s32 %v549, %v552
      %vm554 = vcmp.lt.s32.totalorder %v553, 0
      %v555 = vsub.s32 0, %v553
      %v556 = vsel %vm554, %v555, %v553
      %v557 = vclz %v556
      %v558 = vsub.s32 %v557, 2
      %vm559 = vcmp.gt.s32.totalorder 0, %v558
      %v560 = vsel %vm559, 0, %v558
      %v561 = vsub.s32 32, %v560
      %v562 = vshll.u32 %v553, %v560
      %v563 = vshrl.u32 %v545, %v561
      %v564 = vor.u32 %v562, %v563
      %v565 = vsub.s32 4294967266, %v560
      %v566 = vadd.s32 %v565, 127
      %v567 = vshll.u32 %v566, 23
      %v568 = vor.u32 4788187, %v567
      %v569 = vand.u32 2147483647, %v568
      %v571 = vcvt.s32.f32 %v564
      %v572 = vmul.f32 %v571, %v569
      %v573 = vxor.u32 %v572, 2147483648
      %v574 = vsel %vm491, %v573, %v572
      %v575 = vsub.s32 4, %v551
      %v576 = vsel %vm491, %v575, %v551
      %v577 = vsel %vm490, %v175, %v574
      %v578 = vsel %vm490, 0, %v576
      %v579 = vcosq.f32.pop %v577
      %v580 = vsinq.f32.pop %v577
      %vm581 = vweird.f32 %v175
      %v582 = vand.u32 %v578, 3
      %vm583 = vcmp.lt.s32.totalorder %v582, 2
      %vm584 = vcmp.eq.s32.totalorder %v582, 0
      %v585 = vxor.u32 %v580, 2147483648
      %v586 = vsel %vm584, %v579, %v585
      %vm587 = vcmp.eq.s32.totalorder %v582, 2
      %v588 = vxor.u32 %v579, 2147483648
      %v589 = vsel %vm587, %v588, %v580
      %v590 = vsel %vm583, %v586, %v589
      %v591 = vsel %vm581, nan, %v590
      %v592 = vld [vmem:[%s163] sm:$0x1]
      %v593 = vlaneseq
      %v594 = vshrl.u32 %v593, 7
      %v595 = vsub.s32 0, %v594
      %v596 = vrot.slane %v383, %v595
      %598 = vset.pattern.permute.xlu0 0
      %599 = vperm.xlu0 %598, %v172
      %v600 = vpop.permute.xlu0 %599
      %603 = vset.pattern.permute.xlu0 0
      %604 = vperm.xlu0 %603, %v173
      %v605 = vpop.permute.xlu0 %604
      %v607 = vmul.f32 %v596, %v600
      %v608 = vmul.f32 %v596, %v605
      %v609 = vlaneseq
      %v610 = vshrl.u32 %v609, 7
      %v611 = vsub.s32 0, %v610
      %v612 = vrot.slane %v592, %v611
      %v613 = vadd.f32 %v612, %v607
      %v614 = vadd.f32 %v612, %v608
      %615 = vst [vmem:[%s171] sm:$0xff] %v613
      %616 = vst [vmem:[%s171 + $0x8] sm:$0x3] %v614
      %v617 = vld [vmem:[%s163 + $0x1] sm:$0x1]
      %v618 = vlaneseq
      %v619 = vshrl.u32 %v618, 7
      %v620 = vsub.s32 0, %v619
      %v621 = vrot.slane %v488, %v620
      %v622 = vmul.f32 %v621, %v600
      %v623 = vmul.f32 %v621, %v605
      %v624 = vlaneseq
      %v625 = vshrl.u32 %v624, 7
      %v626 = vsub.s32 0, %v625
      %v627 = vrot.slane %v617, %v626
      %v628 = vadd.f32 %v627, %v622
      %v629 = vadd.f32 %v627, %v623
      %630 = vst [vmem:[%s171 + $0xa] sm:$0xff] %v628
      %631 = vst [vmem:[%s171 + $0x12] sm:$0x3] %v629
      %v632 = vld [vmem:[%s163 + $0x2] sm:$0x1]
      %v633 = vlaneseq
      %v634 = vshrl.u32 %v633, 7
      %v635 = vsub.s32 0, %v634
      %v636 = vrot.slane %v591, %v635
      %v637 = vmul.f32 %v636, %v600
      %v638 = vmul.f32 %v636, %v605
      %v639 = vlaneseq
      %v640 = vshrl.u32 %v639, 7
      %v641 = vsub.s32 0, %v640
      %v642 = vrot.slane %v632, %v641
      %v643 = vadd.f32 %v642, %v637
      %v644 = vadd.f32 %v642, %v638
      %645 = vst [vmem:[%s171 + $0x14] sm:$0xff] %v643
      %646 = vst [vmem:[%s171 + $0x1c] sm:$0x3] %v644
      %p647 = scmp.lt.s32.totalorder %s17, 1
      %s648 = scalar_select %p647, %s17, 1
      %p649 = scmp.lt.s32.totalorder %s18, 0
      %s650 = scalar_select %p649, %s18, 0
      %s651 = smul.addr %s648, 4
      %s652 = sadd.s32 %s650, %s651
      %s653 = smul.addr %s652, 8
      %s654 = scalar_lea.vmem %s2, %s653
      // Predicated region
      $region29: #{tpu_custom_call.1} parent=27 // pred_check
        %p655 = pneg %p94
      $region30: #{tpu_custom_call.1} parent=27 // pred_check_branch
        %657 = sbr.rel (%p655) target = $region32
      $region31: #{tpu_custom_call.1} parent=27 // pred_region
        _
      $region32: #{tpu_custom_call.1} parent=27 // pred_fallthru
        _
    $region28: #{tpu_custom_call.1} parent=5 // pred_fallthru
      _
    %p658 = scmp.le.s32.totalorder 2, %s8
    // Predicated region
    $region33: #{tpu_custom_call.1} parent=5 // pred_check
      %p659 = pneg %p658
    $region34: #{tpu_custom_call.1} parent=5 // pred_check_branch
      %661 = sbr.rel (%p659) target = $region36
    $region35: #{tpu_custom_call.1} parent=5 // pred_region
      %s662 = ssub.s32 %s8, 2
      // Predicated region
      $region37: #{tpu_custom_call.1} parent=35 // pred_check
        %p663 = pneg %p100
      $region38: #{tpu_custom_call.1} parent=35 // pred_check_branch
        %665 = sbr.rel (%p663) target = $region40
      $region39: #{tpu_custom_call.1} parent=35 // pred_region
        %p666 = scmp.lt.s32.totalorder %s19, 1
        %s667 = scalar_select %p666, %s19, 1
        %p668 = scmp.lt.s32.totalorder %s20, 0
        %s669 = scalar_select %p668, %s20, 0
        %s670 = smul.addr %s667, 4
        %s671 = sadd.s32 %s669, %s670
        %s672 = smul.addr %s671, 8
        %s673 = scalar_lea.vmem %s2, %s672
      $region40: #{tpu_custom_call.1} parent=35 // pred_fallthru
        _
    $region36: #{tpu_custom_call.1} parent=5 // pred_fallthru
      _
  $region6: #{tpu_custom_call.1} parent=0 // loop_footer
    %s12 = sadd.s32 1, %s8
  $region7: #{tpu_custom_call.1} parent=0 // loop_footer_branch
    %7 = sbr.rel target = $region3
  $region8: #{tpu_custom_call.1} parent=0 // loop_exit
    _

</llo_original>
